<compile_context>
chip_gen: v5e
topology: v5e:2x2
jax: 0.10.0
libtpu: 0.0.40
codegen_flags: <defaults>
</compile_context>

<pallas_src>
import jax
import jax.numpy as jnp
from jax.experimental import pallas as pl
from jax.experimental.pallas import tpu as pltpu


def _round_up(v, m):
    return ((v + m - 1) // m) * m


def _cdiv(a, b):
    return (a + b - 1) // b


def _physical_vmem_bytes():
    # Trace-time hardware query; fall back to the conservative v7x per-TC figure.
    try:
        return int(pltpu.get_tpu_info().vmem_capacity_bytes)
    except Exception:
        return 64 << 20


def _pick_tn(out_features):
    if out_features >= 1024:
        tn = 512
    elif out_features >= 256:
        tn = 256
    else:
        tn = _round_up(out_features, 128)
    # Megacore (v7x has 2 TensorCores): prefer >= 2 independent j tiles when the
    # output width allows it, so narrow-output layers don't leave a core idle.
    while tn > 128 and _cdiv(out_features, tn) < 2:
        tn = max(128, tn // 2)
    return tn


def _lora_linear_kernel(x_ref, wt_ref, bias_ref, o_ref, acc_ref):
    """Fused base-linear + LoRA GEMM over the augmented contraction axis.

    x_ref    : [tm, tk]      activations tile of [x | scale * x @ A.T]
    wt_ref   : [tk, tn]      cached weight tile of [W.T ; B.T]
    bias_ref : [1, tn] f32   bias tile (folded into the accumulator init)
    o_ref    : [tm, tn]      output tile
    acc_ref  : [tm, tn] f32  VMEM accumulator (persists across k)
    """
    k = pl.program_id(2)

    @pl.when(k == 0)
    def _():
        # Init accumulator with the broadcast bias -> epilogue is just a cast+store.
        acc_ref[...] = jnp.zeros_like(acc_ref) + bias_ref[...]

    acc_ref[...] += jnp.dot(x_ref[...], wt_ref[...],
                            preferred_element_type=jnp.float32)

    @pl.when(k == pl.num_programs(2) - 1)
    def _():
        o_ref[...] = acc_ref[...].astype(o_ref.dtype)


def prepare_lora_linear(w, bias, lora_a, lora_b, alpha=1.0, compute_dtype=None):
    """One-time preprocessing of a LoRA-adapted Linear layer.

    Returns a jitted `forward(x)` that computes
        x @ W.T + bias + (alpha/rank) * x @ A.T @ B.T
    with a single tiled Pallas GEMM over the augmented contraction axis.

    The W transpose / LoRA-B concatenation / zero-padding happen exactly once
    here (cached device arrays) — never on the per-call forward path.
    """
    out_features, in_features = w.shape
    rank, in_a = lora_a.shape
    assert in_a == in_features and lora_b.shape == (out_features, rank)
    scale = alpha / rank

    if compute_dtype is None:
        compute_dtype = jnp.asarray(w).dtype
    compute_dtype = jnp.dtype(compute_dtype)
    stream_itemsize = compute_dtype.itemsize
    # Sublane multiple for the batch tile (8 for f32, 16 for bf16, 32 for 8-bit).
    sub = 8 if stream_itemsize >= 4 else (16 if stream_itemsize == 2 else 32)

    # Augmented weight [W.T ; B.T] : [in + rank, out] — LoRA rides the main GEMM.
    w_aug = jnp.concatenate(
        [jnp.asarray(w).T, jnp.asarray(lora_b).T], axis=0).astype(compute_dtype)
    k_aug = in_features + rank

    tn = _pick_tn(out_features)
    tk = 2048 if k_aug >= 2048 else _round_up(k_aug, 128)
    n_pad = _round_up(out_features, tn)
    k_pad = _round_up(k_aug, tk)

    # Cached, padded device arrays (zeros are neutral in the K reduction).
    w_aug_p = jax.device_put(
        jnp.pad(w_aug, ((0, k_pad - k_aug), (0, n_pad - out_features))))
    bias_p = jax.device_put(
        jnp.pad(jnp.asarray(bias, jnp.float32).reshape(1, out_features),
                ((0, 0), (0, n_pad - out_features))))
    # Scale folded into the cached A.T; per-call LoRA path is one tiny matmul.
    at_scaled = jax.device_put((scale * jnp.asarray(lora_a).T).astype(compute_dtype))

    vmem_phys = _physical_vmem_bytes()

    @jax.jit
    def forward(x):
        batch = x.shape[0]
        out_dtype = x.dtype
        out_itemsize = jnp.dtype(out_dtype).itemsize

        xc = x.astype(compute_dtype)
        # Hoisted LoRA A-path (f32 accumulate, then cast to the streaming dtype).
        t = jnp.dot(xc, at_scaled, preferred_element_type=jnp.float32)
        x_aug = jnp.concatenate([xc, t.astype(compute_dtype)], axis=1)  # [B, k_aug]

        if batch >= 512:
            tm = 512
        elif batch >= 256:
            tm = 256
        else:
            tm = _round_up(batch, sub)
        m_pad = _round_up(batch, tm)
        x_p = jnp.pad(x_aug, ((0, m_pad - batch), (0, k_pad - k_aug)))

        grid = (m_pad // tm, n_pad // tn, k_pad // tk)

        # Double-buffered streams + f32 accumulator + slack; cap at 3/4 of
        # physical VMEM (<= ~48 MiB on v7x, more headroom on v5e/v6e).
        blk_bytes = (tm * tk + tk * tn) * stream_itemsize \
            + tn * 4 + tm * tn * out_itemsize
        vmem_limit = int(min(2 * blk_bytes + tm * tn * 4 + (8 << 20),
                             vmem_phys * 3 // 4))

        flops = 2 * batch * k_aug * out_features + 2 * batch * in_features * rank
        bytes_accessed = (m_pad * k_pad + k_pad * n_pad) * stream_itemsize \
            + n_pad * 4 + m_pad * n_pad * out_itemsize

        out_padded = pl.pallas_call(
            _lora_linear_kernel,
            out_shape=jax.ShapeDtypeStruct((m_pad, n_pad), out_dtype),
            grid_spec=pltpu.PrefetchScalarGridSpec(
                num_scalar_prefetch=0,
                grid=grid,
                in_specs=[
                    pl.BlockSpec((tm, tk), lambda i, j, k: (i, k)),   # [x | t]
                    pl.BlockSpec((tk, tn), lambda i, j, k: (k, j)),   # [W.T ; B.T]
                    pl.BlockSpec((1, tn), lambda i, j, k: (0, j)),    # bias (f32)
                ],
                out_specs=pl.BlockSpec((tm, tn), lambda i, j, k: (i, j)),
                scratch_shapes=[pltpu.VMEM((tm, tn), jnp.float32)],
            ),
            compiler_params=pltpu.CompilerParams(
                dimension_semantics=("parallel", "parallel", "arbitrary"),
                vmem_limit_bytes=vmem_limit,
            ),
            cost_estimate=pl.CostEstimate(
                flops=flops, transcendentals=0, bytes_accessed=bytes_accessed),
        )(x_p, w_aug_p, bias_p)

        return out_padded[:batch, :out_features]

    return forward


def lora_wrapper_forward(x, w, bias, lora_a, lora_b, alpha=1.0, compute_dtype=None):
    """One-shot convenience wrapper (re-does the one-time weight prep).

    For repeated calls, use prepare_lora_linear(...) once and reuse the
    returned callable so the weight transpose/concat/pad is cached.
    """
    return prepare_lora_linear(w, bias, lora_a, lora_b, alpha=alpha,
                               compute_dtype=compute_dtype)(x)


def reference_forward(x, w, bias, lora_a, lora_b, alpha=1.0):
    rank = lora_a.shape[0]
    scale = alpha / rank
    base = x @ w.T + bias[None, :]
    lora = scale * (lora_b @ (lora_a @ x.T)).T
    return base + lora


if __name__ == "__main__":
    key = jax.random.PRNGKey(0)
    (kx, kw, kb, ka, kbb,
     kx2, kw2, kb2, ka2, kbb2) = jax.random.split(key, 10)

    # ---- Small f32 test (strict tolerance) ----
    batch, in_features, out_features, rank = 8, 32, 16, 4
    alpha = 1.0

    x = jax.random.normal(kx, (batch, in_features), dtype=jnp.float32)
    w = jax.random.normal(kw, (out_features, in_features), dtype=jnp.float32) * 0.1
    bias = jax.random.normal(kb, (out_features,), dtype=jnp.float32) * 0.1
    # LoRALayer init would set lora_B = 0; use nonzero so the LoRA path is exercised.
    lora_a = jax.random.normal(ka, (rank, in_features), dtype=jnp.float32) * 0.02
    lora_b = jax.random.normal(kbb, (out_features, rank), dtype=jnp.float32) * 0.02

    fwd = prepare_lora_linear(w, bias, lora_a, lora_b, alpha=alpha)
    out = jax.block_until_ready(fwd(x))
    ref = reference_forward(x, w, bias, lora_a, lora_b, alpha=alpha)
    assert out.shape == (batch, out_features)
    assert jnp.allclose(out, ref, atol=1e-5, rtol=1e-5), \
        float(jnp.max(jnp.abs(out - ref)))

    # ---- Larger test with bf16 weight/activation streaming + f32 accumulation ----
    # Exercises k-tiling, >= 2 output tiles (megacore), and the reduced-precision path.
    b2, in2, out2, r2 = 64, 512, 384, 8
    x2 = jax.random.normal(kx2, (b2, in2), dtype=jnp.float32)
    w2 = jax.random.normal(kw2, (out2, in2), dtype=jnp.float32) * 0.05
    bias2 = jax.random.normal(kb2, (out2,), dtype=jnp.float32) * 0.1
    a2 = jax.random.normal(ka2, (r2, in2), dtype=jnp.float32) * 0.02
    bb2 = jax.random.normal(kbb2, (out2, r2), dtype=jnp.float32) * 0.02

    fwd2 = prepare_lora_linear(w2, bias2, a2, bb2, alpha=2.0,
                               compute_dtype=jnp.bfloat16)
    out2_val = jax.block_until_ready(fwd2(x2))
    ref2 = reference_forward(x2, w2, bias2, a2, bb2, alpha=2.0)
    assert out2_val.shape == (b2, out2)
    assert jnp.allclose(out2_val, ref2, atol=1e-1, rtol=1e-1), \
        float(jnp.max(jnp.abs(out2_val - ref2)))

    print("KERNEL_OK")
</pallas_src>

<mosaic_0001>
module attributes {stable_mosaic.version = 11 : i64} {
  func.func @_lora_linear_kernel(%arg0: i32, %arg1: i32, %arg2: i32, %arg3: memref<8x128xf32, #tpu.memory_space<vmem>>, %arg4: memref<128x128xf32, #tpu.memory_space<vmem>>, %arg5: memref<1x128xf32, #tpu.memory_space<vmem>>, %arg6: memref<8x128xf32, #tpu.memory_space<vmem>>, %arg7: memref<8x128xf32, #tpu.memory_space<vmem>>) attributes {dimension_semantics = [#tpu.dimension_semantics<parallel>, #tpu.dimension_semantics<parallel>, #tpu.dimension_semantics<arbitrary>], iteration_bounds = array<i64: 1, 1, 1>, scalar_prefetch = 0 : i64, scratch_operands = 1 : i64, tpu.core_type = #tpu.core_type<tc>, window_params = [{transform_indices = @transform_0, window_bounds = array<i64: 8, 128>}, {transform_indices = @transform_1, window_bounds = array<i64: 128, 128>}, {transform_indices = @transform_2, window_bounds = array<i64: 1, 128>}, {transform_indices = @transform_3, window_bounds = array<i64: 8, 128>}]} {
    %c0_i32 = arith.constant 0 : i32
    %0 = arith.cmpi eq, %arg2, %c0_i32 : i32
    %1 = arith.extui %0 : i1 to i32
    %c0_i32_0 = arith.constant 0 : i32
    %2 = arith.cmpi ne, %1, %c0_i32_0 : i32
    scf.if %2 {
      %cst_10 = arith.constant 0.000000e+00 : f32
      %12 = vector.broadcast %cst_10 : f32 to vector<8x128xf32>
      %c0_11 = arith.constant 0 : index
      %c0_12 = arith.constant 0 : index
      %13 = vector.load %arg5[%c0_11, %c0_12] : memref<1x128xf32, #tpu.memory_space<vmem>>, vector<1x128xf32>
      %14 = vector.broadcast %13 : vector<1x128xf32> to vector<8x128xf32>
      %15 = arith.addf %12, %14 : vector<8x128xf32>
      %c0_13 = arith.constant 0 : index
      %c0_14 = arith.constant 0 : index
      %16 = vector.load %arg7[%c0_13, %c0_14] : memref<8x128xf32, #tpu.memory_space<vmem>>, vector<8x128xf32>
      tpu.vector_store %arg7[%c0_13, %c0_14], %15 {strides = array<i32>} : memref<8x128xf32, #tpu.memory_space<vmem>>, vector<8x128xf32>,
    } else {
    }
    %c0 = arith.constant 0 : index
    %c0_1 = arith.constant 0 : index
    %3 = vector.load %arg7[%c0, %c0_1] : memref<8x128xf32, #tpu.memory_space<vmem>>, vector<8x128xf32>
    %c0_2 = arith.constant 0 : index
    %c0_3 = arith.constant 0 : index
    %4 = vector.load %arg3[%c0_2, %c0_3] : memref<8x128xf32, #tpu.memory_space<vmem>>, vector<8x128xf32>
    %c0_4 = arith.constant 0 : index
    %c0_5 = arith.constant 0 : index
    %5 = vector.load %arg4[%c0_4, %c0_5] : memref<128x128xf32, #tpu.memory_space<vmem>>, vector<128x128xf32>
    %cst = arith.constant dense<0.000000e+00> : vector<8x128xf32>
    %6 = tpu.matmul %4, %5, %cst {dimension_numbers = #tpu.dot_dimension_numbers<[1], [0], [0], [1], [0, 0, 1, 1], [], []>} : vector<8x128xf32>, vector<128x128xf32>, vector<8x128xf32> -> vector<8x128xf32>
    %7 = arith.addf %3, %6 : vector<8x128xf32>
    %c0_6 = arith.constant 0 : index
    %c0_7 = arith.constant 0 : index
    %8 = vector.load %arg7[%c0_6, %c0_7] : memref<8x128xf32, #tpu.memory_space<vmem>>, vector<8x128xf32>
    tpu.vector_store %arg7[%c0_6, %c0_7], %7 {strides = array<i32>} : memref<8x128xf32, #tpu.memory_space<vmem>>, vector<8x128xf32>,
    %c0_i32_8 = arith.constant 0 : i32
    %9 = arith.cmpi eq, %arg2, %c0_i32_8 : i32
    %10 = arith.extui %9 : i1 to i32
    %c0_i32_9 = arith.constant 0 : i32
    %11 = arith.cmpi ne, %10, %c0_i32_9 : i32
    scf.if %11 {
      %c0_10 = arith.constant 0 : index
      %c0_11 = arith.constant 0 : index
      %12 = vector.load %arg7[%c0_10, %c0_11] : memref<8x128xf32, #tpu.memory_space<vmem>>, vector<8x128xf32>
      %c0_12 = arith.constant 0 : index
      %c0_13 = arith.constant 0 : index
      %13 = vector.load %arg6[%c0_12, %c0_13] : memref<8x128xf32, #tpu.memory_space<vmem>>, vector<8x128xf32>
      tpu.vector_store %arg6[%c0_12, %c0_13], %12 {strides = array<i32>} : memref<8x128xf32, #tpu.memory_space<vmem>>, vector<8x128xf32>,
    } else {
    }
    return
  }
  func.func @transform_0(%arg0: i32, %arg1: i32, %arg2: i32) -> (i32, i32) {
    %c0_i32 = arith.constant 0 : i32
    return %arg0, %arg2 : i32, i32
  }
  func.func @transform_1(%arg0: i32, %arg1: i32, %arg2: i32) -> (i32, i32) {
    %c0_i32 = arith.constant 0 : i32
    return %arg2, %arg1 : i32, i32
  }
  func.func @transform_2(%arg0: i32, %arg1: i32, %arg2: i32) -> (i32, i32) {
    %c0_i32 = arith.constant 0 : i32
    %c0_i32_0 = arith.constant 0 : i32
    return %c0_i32, %arg1 : i32, i32
  }
  func.func @transform_3(%arg0: i32, %arg1: i32, %arg2: i32) -> (i32, i32) {
    %c0_i32 = arith.constant 0 : i32
    return %arg0, %arg1 : i32, i32
  }
}

</mosaic_0001>

<llo_original>
// kernel: forward.1
$region0: #{forward.1}
  #allocation0 [shape = 'u32[]', space=smem, size = 0x4, offset = 0x4, fixed_abs, tag = 'smem constant byte address 0x4 - core index']
  #allocation1 [shape = 'u32[72,128]{1,0:T(1,128)}', space=vmem, size = 0x9000, scoped, tag = 'internal scratch']
  #allocation2 [shape = 'f32[8,128]{1,0:T(8,128)}', space=vmem, size = 0x1000, scoped, tag = 'scratch operand']
  %s0 = inlined_call_operand.vmem [shape: f32[8,128], index: 0, kind: input, shape index: {}]
  %s1 = inlined_call_operand.hbm [shape: f32[128,128], index: 1, kind: input, shape index: {}]
  %s2 = inlined_call_operand.vmem [shape: f32[1,128], index: 2, kind: input, shape index: {}]
  %s3 = inlined_call_operand.hbm [shape: f32[8,128], index: 3, kind: output, shape index: {}]
  %s4 = sld [smem:[#allocation0]]
  $region34: #{forward.1} parent=0
    _
  %s6 = ssub.s32 1, %s4
  %s7 = scalar_select 0, %s6, %s4
  $region1: #{forward.1} parent=0
    #allocation3 [shape = 'u8[65536]{0}', space=vmem, size = 0x10000, scoped, tag = 'input window, operand 1, single buffered']
    #allocation4 [shape = 's32[1]{0}', space=sflag, size = 0x4, scoped, tag = 'scoped memory for forward.1']
    #allocation5 [shape = 's32[1]{0}', space=sflag, size = 0x4, scoped, tag = 'scoped memory for forward.1']
    #allocation6 [shape = 'u8[4096]{0}', space=vmem, size = 0x1000, scoped, tag = 'output window, operand 0, single buffered']
    %8 = vsyncpa [#allocation4], 0
    %9 = vsyncpa [#allocation5], 0
    // Predicated region
    $region2: #{forward.1} parent=1 // pred_check
      _
    $region3: #{forward.1} parent=1 // pred_check_branch
      %11 = sbr.rel (0) target = $region5
    $region4: #{forward.1} parent=1 // pred_region
      _
    $region5: #{forward.1} parent=1 // pred_fallthru
      _
    // Predicated region
    $region6: #{forward.1} parent=1 // pred_check
      _
    $region7: #{forward.1} parent=1 // pred_check_branch
      %13 = sbr.rel (0) target = $region9
    $region8: #{forward.1} parent=1 // pred_region
      %15 = vsyncadd [#allocation4], 0
      %s16 = sshll.u32 %s1, 4
      %s17 = int_to_ptr.hbm [resolvable:$true] %s16
      %s18 = sshll.u32 [#allocation3], 4
      %s19 = int_to_ptr.vmem [resolvable:$true] %s18
      %24 = dma.hbm_to_vmem [thread:$0]  %s17, 2048, %s19, [#allocation4], 128, 128, 8
    $region9: #{forward.1} parent=1 // pred_fallthru
      _
    // Predicated region
    $region10: #{forward.1} parent=1 // pred_check
      _
    $region11: #{forward.1} parent=1 // pred_check_branch
      %26 = sbr.rel (0) target = $region13
    $region12: #{forward.1} parent=1 // pred_region
      _
    $region13: #{forward.1} parent=1 // pred_fallthru
      _
    // Predicated region
    $region14: #{forward.1} parent=1 // pred_check
      _
    $region15: #{forward.1} parent=1 // pred_check_branch
      %28 = sbr.rel (0) target = $region17
    $region16: #{forward.1} parent=1 // pred_region
      %30 = dma.done [#allocation4], 2048
    $region17: #{forward.1} parent=1 // pred_fallthru
      _
    %p31 = scmp.eq.s32.totalorder 0, 0
    // Predicated region
    $region18: #{forward.1} parent=1 // pred_check
      %p32 = pneg %p31
    $region19: #{forward.1} parent=1 // pred_check_branch
      %34 = sbr.rel (%p32) target = $region21
    $region20: #{forward.1} parent=1 // pred_region
      %v35 = vld [vmem:[%s2] sm:$0x1]
      %v37 = vperm.slane %v35, 0
      %v39 = vadd.f32 %v37, 0.0
      %40 = vst [vmem:[#allocation2] sm:$0xff] %v39
    $region21: #{forward.1} parent=1 // pred_fallthru
      _
    %v41 = vld [vmem:[#allocation2] sm:$0xff]
    %v42 = vld [vmem:[%s0] sm:$0xff]
    %v43 = vld [vmem:[#allocation3] sm:$0xff]
    %v44 = vld [vmem:[#allocation3 + $0x8] sm:$0xff]
    %v45 = vld [vmem:[#allocation3 + $0x10] sm:$0xff]
    %v46 = vld [vmem:[#allocation3 + $0x18] sm:$0xff]
    %v47 = vld [vmem:[#allocation3 + $0x20] sm:$0xff]
    %v48 = vld [vmem:[#allocation3 + $0x28] sm:$0xff]
    %v49 = vld [vmem:[#allocation3 + $0x30] sm:$0xff]
    %v50 = vld [vmem:[#allocation3 + $0x38] sm:$0xff]
    %v51 = vld [vmem:[#allocation3 + $0x40] sm:$0xff]
    %v52 = vld [vmem:[#allocation3 + $0x48] sm:$0xff]
    %v53 = vld [vmem:[#allocation3 + $0x50] sm:$0xff]
    %v54 = vld [vmem:[#allocation3 + $0x58] sm:$0xff]
    %v55 = vld [vmem:[#allocation3 + $0x60] sm:$0xff]
    %v56 = vld [vmem:[#allocation3 + $0x68] sm:$0xff]
    %v57 = vld [vmem:[#allocation3 + $0x70] sm:$0xff]
    %v58 = vld [vmem:[#allocation3 + $0x78] sm:$0xff]
    %59 = vmatpush.msra.mxu0 %v58
    %60 = vmatpush.msra.mxu0 %v57
    %61 = vmatpush.msra.mxu0 %v56
    %62 = vmatpush.msra.mxu0 %v55
    %63 = vmatpush.msra.mxu0 %v54
    %64 = vmatpush.msra.mxu0 %v53
    %65 = vmatpush.msra.mxu0 %v52
    %66 = vmatpush.msra.mxu0 %v51
    %67 = vmatpush.msra.mxu0 %v50
    %68 = vmatpush.msra.mxu0 %v49
    %69 = vmatpush.msra.mxu0 %v48
    %70 = vmatpush.msra.mxu0 %v47
    %71 = vmatpush.msra.mxu0 %v46
    %72 = vmatpush.msra.mxu0 %v45
    %73 = vmatpush.msra.mxu0 %v44
    %74 = vmatpush.msra.mxu0 %v43
    %75 = vmatmul.f32.gmra.mxu0 %v42
    %v76 = vpop.f32.mrf.mxu0
    %v77 = vadd.f32 0.0, %v76
    %78 = vdwg.mxu0
    %v79 = vadd.f32 %v41, %v77
    %80 = vst [vmem:[#allocation2] sm:$0xff] %v79
    // Predicated region
    $region22: #{forward.1} parent=1 // pred_check
      %p81 = pneg %p31
    $region23: #{forward.1} parent=1 // pred_check_branch
      %83 = sbr.rel (%p81) target = $region25
    $region24: #{forward.1} parent=1 // pred_region
      %v84 = vld [vmem:[#allocation2] sm:$0xff]
      %85 = vst [vmem:[#allocation6] sm:$0xff] %v84
    $region25: #{forward.1} parent=1 // pred_fallthru
      _
    // Predicated region
    $region26: #{forward.1} parent=1 // pred_check
      _
    $region27: #{forward.1} parent=1 // pred_check_branch
      %87 = sbr.rel (0) target = $region29
    $region28: #{forward.1} parent=1 // pred_region
      %89 = vsyncadd [#allocation5], 0
      %s91 = sshll.u32 [#allocation6], 4
      %s92 = int_to_ptr.vmem [resolvable:$true] %s91
      %s93 = sshll.u32 %s3, 4
      %s94 = int_to_ptr.hbm [resolvable:$true] %s93
      %96 = dma.vmem_to_hbm [thread:$0]  %s92, 128, %s94, [#allocation5]
    $region29: #{forward.1} parent=1 // pred_fallthru
      _
    // Predicated region
    $region30: #{forward.1} parent=1 // pred_check
      _
    $region31: #{forward.1} parent=1 // pred_check_branch
      %98 = sbr.rel (0) target = $region33
    $region32: #{forward.1} parent=1 // pred_region
      %100 = dma.done [#allocation5], 128
    $region33: #{forward.1} parent=1 // pred_fallthru
      _
    %101 = vsyncpa [#allocation4], 1
    %102 = vsyncpa [#allocation5], 1

</llo_original>
